<compile_context>
chip_gen: v7x
topology: tpu7x:2x2x1
jax: 0.10.0
libtpu: 0.0.40
codegen_flags: <defaults>
</compile_context>

<pallas_src>
import functools

import jax
import jax.numpy as jnp
from jax.experimental import pallas as pl
from jax.experimental.pallas import tpu as pltpu


def _v_kernel(theta_ref, wincat_ref, bincat_ref, whid_ref, bhid_ref,
              swout_ref, woutre_ref, o_ref, *, depth, width, fuse_hidden):
    """One batch tile of V: all three sub-nets computed in VMEM."""
    theta = theta_ref[...]                                     # (bm, dim) f32
    bm = theta.shape[0]

    def dot(a, w):
        # bf16 operands (halved weight DMA, single MXU pass), f32 accumulation.
        return jnp.dot(a.astype(jnp.bfloat16), w, preferred_element_type=jnp.float32)

    def relu(v):
        return jnp.maximum(v, 0.0)

    # ---- Fused input layer: ONE (bm, dim) x (dim, 3*width) matmul feeds S, R, E ----
    pre = dot(theta, wincat_ref[...]) + bincat_ref[...]        # (bm, 3*width) f32
    h_s = jax.nn.sigmoid(pre[:, :width])
    h_r = relu(pre[:, width:2 * width])
    h_e = relu(pre[:, 2 * width:])

    # ---- Hidden blocks ----
    if fuse_hidden:
        # Small (latency-bound) tiles: fuse the 3 per-sub-net matmuls per depth step
        # into one K=3*width matmul with a block-diagonal activation tile. The stacked
        # hidden weights remain (3*width, width), so HBM traffic is unchanged.
        zero = jnp.zeros((bm, width), jnp.float32)
        for i in range(depth):
            blockdiag = jnp.concatenate([
                jnp.concatenate([h_s, zero, zero], axis=1),
                jnp.concatenate([zero, h_r, zero], axis=1),
                jnp.concatenate([zero, zero, h_e], axis=1),
            ], axis=0)                                         # (3*bm, 3*width)
            out = dot(blockdiag, whid_ref[i])                  # (3*bm, width)
            h_s = jax.nn.sigmoid(out[:bm] + bhid_ref[0, i])
            h_r = h_r + relu(out[bm:2 * bm] + bhid_ref[1, i])  # ResNet residual
            h_e = relu(out[2 * bm:] + bhid_ref[2, i])
    else:
        for i in range(depth):
            h_s = jax.nn.sigmoid(dot(h_s, whid_ref[i, :width, :]) + bhid_ref[0, i])
            h_r = h_r + relu(dot(h_r, whid_ref[i, width:2 * width, :]) + bhid_ref[1, i])
            h_e = relu(dot(h_e, whid_ref[i, 2 * width:, :]) + bhid_ref[2, i])

    # ---- Output heads ----
    # S head: width -> 1 as VPU multiply + XLU lane reduce (no N=1 MXU matmul).
    s = jnp.sum(h_s * swout_ref[...].astype(jnp.float32), axis=-1, keepdims=True)  # (bm,1)
    r = dot(h_r, woutre_ref[0])                                # (bm, dim)
    e = dot(h_e, woutre_ref[1])                                # (bm, dim)

    # dtheta_dt = S * (R + E * theta); dropout is a no-op at p=0 / eval.
    o_ref[...] = (s * (r + e * theta)).astype(o_ref.dtype)


def _const_spec(shape, single_buffer):
    """Full-extent, grid-invariant block (weights stay VMEM-resident)."""
    zeros = (0,) * len(shape)
    idx = lambda i, _z=zeros: _z
    if single_buffer:
        try:
            # Don't double-buffer grid-invariant weights (matters for VMEM pressure
            # on v7x's 64 MiB once width/depth scale up).
            return pl.BlockSpec(shape, idx, pipeline_mode=pl.Buffered(1))
        except Exception:  # pragma: no cover — fall back if pipeline_mode unsupported
            pass
    return pl.BlockSpec(shape, idx)


def _default_batch_block(B):
    if B <= 8:
        return B
    # Aim for >=2 grid steps (v7x dual-TC sharding) and cap at 256 rows so theta/out
    # DMAs pipeline behind compute without blowing per-tile VMEM.
    half = -(-B // 2)              # cdiv(B, 2)
    half = -(-half // 8) * 8       # round up to a sublane multiple
    return min(256, max(8, half))


def pack_params(raw_params):
    """Stack/merge module-form params into the kernel layout (bf16 weights)."""
    win, bin_, whid, bhid, s_wout, r_wout, e_wout = raw_params
    _, dim, width = win.shape
    depth = whid.shape[1]
    # Input layer fused across the 3 sub-nets: (dim, 3*width), bias (1, 3*width).
    win_cat = jnp.concatenate([win[0], win[1], win[2]], axis=1).astype(jnp.bfloat16)
    bin_cat = jnp.concatenate([bin_[0], bin_[1], bin_[2]], axis=1).astype(jnp.float32)
    # Hidden weights vertically stacked per depth step: (depth, 3*width, width).
    whid_stack = jnp.stack(
        [jnp.concatenate([whid[0, i], whid[1, i], whid[2, i]], axis=0)
         for i in range(depth)], axis=0).astype(jnp.bfloat16)
    bhid_f32 = bhid.astype(jnp.float32)                        # (3, depth, 1, width)
    s_wout_row = s_wout.reshape(1, width).astype(jnp.bfloat16)
    wout_re = jnp.stack([r_wout, e_wout], axis=0).astype(jnp.bfloat16)  # (2, width, dim)
    return win_cat, bin_cat, whid_stack, bhid_f32, s_wout_row, wout_re


def v_forward(theta, packed, *, depth, batch_block=None):
    """Pallas forward: theta (B, dim) -> dtheta_dt (B, dim)."""
    win_cat, bin_cat, whid_stack, bhid, s_wout_row, wout_re = packed
    B, dim = theta.shape
    width = whid_stack.shape[-1]

    # --- batch tiling (pad B so no grid step reads undefined rows) ---
    bm = _default_batch_block(B) if batch_block is None else min(batch_block, B)
    bm = max(8, (bm // 8) * 8) if B >= 8 else B
    Bp = pl.cdiv(B, bm) * bm
    theta_p = theta if Bp == B else jnp.pad(theta, ((0, Bp - B), (0, 0)))
    grid = (Bp // bm,)

    # Block-diagonal hidden fusion only pays off for small, latency-bound tiles.
    fuse_hidden = bm <= 64

    weight_bytes = (win_cat.nbytes + bin_cat.nbytes + whid_stack.nbytes + bhid.nbytes
                    + s_wout_row.nbytes + wout_re.nbytes)
    # Single-buffer the resident weights only once doubling them would actually hurt.
    single_buffer = 2 * weight_bytes > (8 << 20)
    wbuf_bytes = weight_bytes if single_buffer else 2 * weight_bytes
    io_bytes = 2 * 2 * bm * dim * 4                       # theta + out, double-buffered
    act_bytes = 24 * bm * max(3 * width, dim) * 4         # rough per-tile activation bound
    vmem_limit = int(min(64 << 20,
                         max(32 << 20, wbuf_bytes + io_bytes + act_bytes + (4 << 20))))

    # Advisory cost estimate so XLA schedules around this small custom call.
    matmul_flops = 2 * Bp * (dim * 3 * width + 3 * depth * width * width + 2 * width * dim)
    s_head_flops = 2 * Bp * width
    elementwise_flops = Bp * (3 * (depth + 1) * width + 4 * dim)
    transcendentals = Bp * width * (depth + 1)            # sigmoids in S
    bytes_accessed = int(theta_p.nbytes + weight_bytes + Bp * dim * 4)
    cost = pl.CostEstimate(flops=int(matmul_flops + s_head_flops + elementwise_flops),
                           transcendentals=int(transcendentals),
                           bytes_accessed=bytes_accessed)

    kernel = functools.partial(_v_kernel, depth=depth, width=width,
                               fuse_hidden=fuse_hidden)

    out = pl.pallas_call(
        kernel,
        out_shape=jax.ShapeDtypeStruct((Bp, dim), jnp.float32),
        grid=grid,
        in_specs=[
            pl.BlockSpec((bm, dim), lambda i: (i, 0)),    # theta: tiled over batch
            _const_spec(win_cat.shape, single_buffer),
            _const_spec(bin_cat.shape, single_buffer),
            _const_spec(whid_stack.shape, single_buffer),
            _const_spec(bhid.shape, single_buffer),
            _const_spec(s_wout_row.shape, single_buffer),
            _const_spec(wout_re.shape, single_buffer),
        ],
        out_specs=pl.BlockSpec((bm, dim), lambda i: (i, 0)),
        compiler_params=pltpu.CompilerParams(
            dimension_semantics=("parallel",),
            vmem_limit_bytes=vmem_limit),
        cost_estimate=cost,
    )(theta_p, win_cat, bin_cat, whid_stack, bhid, s_wout_row, wout_re)

    return out[:B] if Bp != B else out


def reference_forward_f32(theta, raw_params, *, depth):
    """Full-f32 (HIGHEST precision) reference matching the PyTorch V module (eval)."""
    win, bin_, whid, bhid, s_wout, r_wout, e_wout = raw_params
    hi = jax.lax.Precision.HIGHEST
    dot = lambda a, b: jnp.dot(a, b, precision=hi)
    relu = lambda v: jnp.maximum(v, 0.0)

    h = jax.nn.sigmoid(dot(theta, win[0]) + bin_[0])
    for i in range(depth):
        h = jax.nn.sigmoid(dot(h, whid[0, i]) + bhid[0, i])
    S = dot(h, s_wout)

    h = relu(dot(theta, win[1]) + bin_[1])
    for i in range(depth):
        h = h + relu(dot(h, whid[1, i]) + bhid[1, i])
    R = dot(h, r_wout)

    h = relu(dot(theta, win[2]) + bin_[2])
    for i in range(depth):
        h = relu(dot(h, whid[2, i]) + bhid[2, i])
    E = dot(h, e_wout)
    return S * (R + E * theta)


def reference_forward_bf16(theta, raw_params, *, depth):
    """Reference that emulates the kernel numerics: bf16 operands, f32 accumulation."""
    win, bin_, whid, bhid, s_wout, r_wout, e_wout = raw_params
    b = lambda x: x.astype(jnp.bfloat16)
    dot = lambda a, w: jnp.dot(b(a), b(w), preferred_element_type=jnp.float32)
    relu = lambda v: jnp.maximum(v, 0.0)

    h = jax.nn.sigmoid(dot(theta, win[0]) + bin_[0])
    for i in range(depth):
        h = jax.nn.sigmoid(dot(h, whid[0, i]) + bhid[0, i])
    S = jnp.sum(h * b(s_wout).astype(jnp.float32).reshape(1, -1), axis=-1, keepdims=True)

    h = relu(dot(theta, win[1]) + bin_[1])
    for i in range(depth):
        h = h + relu(dot(h, whid[1, i]) + bhid[1, i])
    R = dot(h, r_wout)

    h = relu(dot(theta, win[2]) + bin_[2])
    for i in range(depth):
        h = relu(dot(h, whid[2, i]) + bhid[2, i])
    E = dot(h, e_wout)
    return S * (R + E * theta)


if __name__ == "__main__":
    # SMALL, TPU-friendly shapes consistent with V(dim, width, depth):
    # dim = width = 128 (lane-dense), depth = 2 hidden blocks, batch = 8.
    dim, width, depth, batch = 128, 128, 2, 8

    key = jax.random.PRNGKey(0)
    keys = jax.random.split(key, 8)
    scale_in = 1.0 / float(dim) ** 0.5
    scale_hid = 1.0 / float(width) ** 0.5

    theta = jax.random.normal(keys[0], (batch, dim), dtype=jnp.float32)
    # Module-form params, stacked by role: index 0 -> S, 1 -> R, 2 -> E.
    win = jax.random.normal(keys[1], (3, dim, width), dtype=jnp.float32) * scale_in
    bin_ = jax.random.normal(keys[2], (3, 1, width), dtype=jnp.float32) * scale_in
    whid = jax.random.normal(keys[3], (3, depth, width, width), dtype=jnp.float32) * scale_hid
    bhid = jax.random.normal(keys[4], (3, depth, 1, width), dtype=jnp.float32) * scale_hid
    s_wout = jax.random.normal(keys[5], (width, 1), dtype=jnp.float32) * scale_hid
    r_wout = jax.random.normal(keys[6], (width, dim), dtype=jnp.float32) * scale_hid
    e_wout = jax.random.normal(keys[7], (width, dim), dtype=jnp.float32) * scale_hid

    raw_params = (win, bin_, whid, bhid, s_wout, r_wout, e_wout)
    packed = pack_params(raw_params)

    out = v_forward(theta, packed, depth=depth)
    out = jax.block_until_ready(out)
    assert out.shape == (batch, dim)

    # Tight check vs a pure-JAX reference with identical numerics (bf16 operands,
    # f32 accumulation).
    ref_bf16 = reference_forward_bf16(theta, raw_params, depth=depth)
    assert jnp.allclose(out, ref_bf16, atol=2e-3, rtol=2e-3), "mismatch vs bf16 reference"

    # Loose check vs the full-f32 module semantics; tolerance budgets the bf16
    # weight/activation quantization applied in the kernel.
    ref_f32 = reference_forward_f32(theta, raw_params, depth=depth)
    assert jnp.allclose(out, ref_f32, atol=1e-1, rtol=1e-1), "mismatch vs f32 reference"

    print("KERNEL_OK")
</pallas_src>

<mosaic_0001>
module attributes {stable_mosaic.version = 11 : i64} {
  func.func @_v_kernel(%arg0: i32, %arg1: memref<8x128xf32, #tpu.memory_space<vmem>>, %arg2: memref<128x384xbf16, #tpu.memory_space<vmem>>, %arg3: memref<1x384xf32, #tpu.memory_space<vmem>>, %arg4: memref<2x384x128xbf16, #tpu.memory_space<vmem>>, %arg5: memref<3x2x1x128xf32, #tpu.memory_space<vmem>>, %arg6: memref<1x128xbf16, #tpu.memory_space<vmem>>, %arg7: memref<2x128x128xbf16, #tpu.memory_space<vmem>>, %arg8: memref<8x128xf32, #tpu.memory_space<vmem>>) attributes {dimension_semantics = [#tpu.dimension_semantics<parallel>], iteration_bounds = array<i64: 1>, scalar_prefetch = 0 : i64, scratch_operands = 0 : i64, tpu.core_type = #tpu.core_type<tc>, window_params = [{transform_indices = @transform_0, window_bounds = array<i64: 8, 128>}, {pipeline_mode = #tpu.pipeline_mode<synchronous>, transform_indices = @transform_1, window_bounds = array<i64: 128, 384>}, {pipeline_mode = #tpu.pipeline_mode<synchronous>, transform_indices = @transform_2, window_bounds = array<i64: 1, 384>}, {pipeline_mode = #tpu.pipeline_mode<synchronous>, transform_indices = @transform_3, window_bounds = array<i64: 2, 384, 128>}, {pipeline_mode = #tpu.pipeline_mode<synchronous>, transform_indices = @transform_4, window_bounds = array<i64: 3, 2, 1, 128>}, {pipeline_mode = #tpu.pipeline_mode<synchronous>, transform_indices = @transform_5, window_bounds = array<i64: 1, 128>}, {pipeline_mode = #tpu.pipeline_mode<synchronous>, transform_indices = @transform_6, window_bounds = array<i64: 2, 128, 128>}, {transform_indices = @transform_7, window_bounds = array<i64: 8, 128>}]} {
    %c0 = arith.constant 0 : index
    %c0_0 = arith.constant 0 : index
    %0 = vector.load %arg1[%c0, %c0_0] : memref<8x128xf32, #tpu.memory_space<vmem>>, vector<8x128xf32>
    %c0_1 = arith.constant 0 : index
    %c0_2 = arith.constant 0 : index
    %1 = vector.load %arg2[%c0_1, %c0_2] : memref<128x384xbf16, #tpu.memory_space<vmem>>, vector<128x384xbf16>
    %2 = arith.truncf %0 : vector<8x128xf32> to vector<8x128xbf16>
    %cst = arith.constant dense<0.000000e+00> : vector<8x384xf32>
    %3 = tpu.matmul %2, %1, %cst {dimension_numbers = #tpu.dot_dimension_numbers<[1], [0], [0], [1], [0, 0, 1, 1], [], []>} : vector<8x128xbf16>, vector<128x384xbf16>, vector<8x384xf32> -> vector<8x384xf32>
    %c0_3 = arith.constant 0 : index
    %c0_4 = arith.constant 0 : index
    %4 = vector.load %arg3[%c0_3, %c0_4] : memref<1x384xf32, #tpu.memory_space<vmem>>, vector<1x384xf32>
    %5 = vector.broadcast %4 : vector<1x384xf32> to vector<8x384xf32>
    %6 = arith.addf %3, %5 : vector<8x384xf32>
    %7 = vector.extract_strided_slice %6 {offsets = [0, 0], sizes = [8, 128], strides = [1, 1]} : vector<8x384xf32> to vector<8x128xf32>
    %8 = arith.negf %7 : vector<8x128xf32>
    %9 = math.exp %8 : vector<8x128xf32>
    %cst_5 = arith.constant 1.000000e+00 : f32
    %10 = vector.broadcast %cst_5 : f32 to vector<8x128xf32>
    %11 = arith.addf %10, %9 : vector<8x128xf32>
    %12 = arith.divf %10, %11 : vector<8x128xf32>
    %13 = vector.extract_strided_slice %6 {offsets = [0, 128], sizes = [8, 128], strides = [1, 1]} : vector<8x384xf32> to vector<8x128xf32>
    %cst_6 = arith.constant 0.000000e+00 : f32
    %14 = vector.broadcast %cst_6 : f32 to vector<8x128xf32>
    %15 = arith.maximumf %13, %14 : vector<8x128xf32>
    %16 = vector.extract_strided_slice %6 {offsets = [0, 256], sizes = [8, 128], strides = [1, 1]} : vector<8x384xf32> to vector<8x128xf32>
    %cst_7 = arith.constant 0.000000e+00 : f32
    %17 = vector.broadcast %cst_7 : f32 to vector<8x128xf32>
    %18 = arith.maximumf %16, %17 : vector<8x128xf32>
    %cst_8 = arith.constant 0.000000e+00 : f32
    %19 = vector.broadcast %cst_8 : f32 to vector<8x128xf32>
    %20 = tpu.concatenate %12, %19, %19 in 1 : vector<8x128xf32>, vector<8x128xf32>, vector<8x128xf32> -> vector<8x384xf32>
    %21 = tpu.concatenate %19, %15, %19 in 1 : vector<8x128xf32>, vector<8x128xf32>, vector<8x128xf32> -> vector<8x384xf32>
    %22 = tpu.concatenate %19, %19, %18 in 1 : vector<8x128xf32>, vector<8x128xf32>, vector<8x128xf32> -> vector<8x384xf32>
    %23 = tpu.concatenate %20, %21, %22 in 0 : vector<8x384xf32>, vector<8x384xf32>, vector<8x384xf32> -> vector<24x384xf32>
    %c0_9 = arith.constant 0 : index
    %c0_10 = arith.constant 0 : index
    %c0_11 = arith.constant 0 : index
    %24 = vector.load %arg4[%c0_9, %c0_10, %c0_11] : memref<2x384x128xbf16, #tpu.memory_space<vmem>>, vector<1x384x128xbf16>
    %25 = vector.shape_cast %24 : vector<1x384x128xbf16> to vector<384x128xbf16>
    %26 = arith.truncf %23 : vector<24x384xf32> to vector<24x384xbf16>
    %cst_12 = arith.constant dense<0.000000e+00> : vector<24x128xf32>
    %27 = tpu.matmul %26, %25, %cst_12 {dimension_numbers = #tpu.dot_dimension_numbers<[1], [0], [0], [1], [0, 0, 1, 1], [], []>} : vector<24x384xbf16>, vector<384x128xbf16>, vector<24x128xf32> -> vector<24x128xf32>
    %28 = vector.extract_strided_slice %27 {offsets = [0, 0], sizes = [8, 128], strides = [1, 1]} : vector<24x128xf32> to vector<8x128xf32>
    %c0_13 = arith.constant 0 : index
    %c0_14 = arith.constant 0 : index
    %c0_15 = arith.constant 0 : index
    %c0_16 = arith.constant 0 : index
    %29 = vector.load %arg5[%c0_13, %c0_14, %c0_15, %c0_16] : memref<3x2x1x128xf32, #tpu.memory_space<vmem>>, vector<1x1x1x128xf32>
    %30 = vector.shape_cast %29 : vector<1x1x1x128xf32> to vector<1x128xf32>
    %31 = vector.broadcast %30 : vector<1x128xf32> to vector<8x128xf32>
    %32 = arith.addf %28, %31 : vector<8x128xf32>
    %33 = arith.negf %32 : vector<8x128xf32>
    %34 = math.exp %33 : vector<8x128xf32>
    %cst_17 = arith.constant 1.000000e+00 : f32
    %35 = vector.broadcast %cst_17 : f32 to vector<8x128xf32>
    %36 = arith.addf %35, %34 : vector<8x128xf32>
    %37 = arith.divf %35, %36 : vector<8x128xf32>
    %38 = vector.extract_strided_slice %27 {offsets = [8, 0], sizes = [8, 128], strides = [1, 1]} : vector<24x128xf32> to vector<8x128xf32>
    %c1 = arith.constant 1 : index
    %c0_18 = arith.constant 0 : index
    %c0_19 = arith.constant 0 : index
    %c0_20 = arith.constant 0 : index
    %39 = vector.load %arg5[%c1, %c0_18, %c0_19, %c0_20] : memref<3x2x1x128xf32, #tpu.memory_space<vmem>>, vector<1x1x1x128xf32>
    %40 = vector.shape_cast %39 : vector<1x1x1x128xf32> to vector<1x128xf32>
    %41 = vector.broadcast %40 : vector<1x128xf32> to vector<8x128xf32>
    %42 = arith.addf %38, %41 : vector<8x128xf32>
    %cst_21 = arith.constant 0.000000e+00 : f32
    %43 = vector.broadcast %cst_21 : f32 to vector<8x128xf32>
    %44 = arith.maximumf %42, %43 : vector<8x128xf32>
    %45 = arith.addf %15, %44 : vector<8x128xf32>
    %46 = vector.extract_strided_slice %27 {offsets = [16, 0], sizes = [8, 128], strides = [1, 1]} : vector<24x128xf32> to vector<8x128xf32>
    %c2 = arith.constant 2 : index
    %c0_22 = arith.constant 0 : index
    %c0_23 = arith.constant 0 : index
    %c0_24 = arith.constant 0 : index
    %47 = vector.load %arg5[%c2, %c0_22, %c0_23, %c0_24] : memref<3x2x1x128xf32, #tpu.memory_space<vmem>>, vector<1x1x1x128xf32>
    %48 = vector.shape_cast %47 : vector<1x1x1x128xf32> to vector<1x128xf32>
    %49 = vector.broadcast %48 : vector<1x128xf32> to vector<8x128xf32>
    %50 = arith.addf %46, %49 : vector<8x128xf32>
    %cst_25 = arith.constant 0.000000e+00 : f32
    %51 = vector.broadcast %cst_25 : f32 to vector<8x128xf32>
    %52 = arith.maximumf %50, %51 : vector<8x128xf32>
    %53 = tpu.concatenate %37, %19, %19 in 1 : vector<8x128xf32>, vector<8x128xf32>, vector<8x128xf32> -> vector<8x384xf32>
    %54 = tpu.concatenate %19, %45, %19 in 1 : vector<8x128xf32>, vector<8x128xf32>, vector<8x128xf32> -> vector<8x384xf32>
    %55 = tpu.concatenate %19, %19, %52 in 1 : vector<8x128xf32>, vector<8x128xf32>, vector<8x128xf32> -> vector<8x384xf32>
    %56 = tpu.concatenate %53, %54, %55 in 0 : vector<8x384xf32>, vector<8x384xf32>, vector<8x384xf32> -> vector<24x384xf32>
    %c1_26 = arith.constant 1 : index
    %c0_27 = arith.constant 0 : index
    %c0_28 = arith.constant 0 : index
    %57 = vector.load %arg4[%c1_26, %c0_27, %c0_28] : memref<2x384x128xbf16, #tpu.memory_space<vmem>>, vector<1x384x128xbf16>
    %58 = vector.shape_cast %57 : vector<1x384x128xbf16> to vector<384x128xbf16>
    %59 = arith.truncf %56 : vector<24x384xf32> to vector<24x384xbf16>
    %cst_29 = arith.constant dense<0.000000e+00> : vector<24x128xf32>
    %60 = tpu.matmul %59, %58, %cst_29 {dimension_numbers = #tpu.dot_dimension_numbers<[1], [0], [0], [1], [0, 0, 1, 1], [], []>} : vector<24x384xbf16>, vector<384x128xbf16>, vector<24x128xf32> -> vector<24x128xf32>
    %61 = vector.extract_strided_slice %60 {offsets = [0, 0], sizes = [8, 128], strides = [1, 1]} : vector<24x128xf32> to vector<8x128xf32>
    %c0_30 = arith.constant 0 : index
    %c1_31 = arith.constant 1 : index
    %c0_32 = arith.constant 0 : index
    %c0_33 = arith.constant 0 : index
    %62 = vector.load %arg5[%c0_30, %c1_31, %c0_32, %c0_33] : memref<3x2x1x128xf32, #tpu.memory_space<vmem>>, vector<1x1x1x128xf32>
    %63 = vector.shape_cast %62 : vector<1x1x1x128xf32> to vector<1x128xf32>
    %64 = vector.broadcast %63 : vector<1x128xf32> to vector<8x128xf32>
    %65 = arith.addf %61, %64 : vector<8x128xf32>
    %66 = arith.negf %65 : vector<8x128xf32>
    %67 = math.exp %66 : vector<8x128xf32>
    %cst_34 = arith.constant 1.000000e+00 : f32
    %68 = vector.broadcast %cst_34 : f32 to vector<8x128xf32>
    %69 = arith.addf %68, %67 : vector<8x128xf32>
    %70 = arith.divf %68, %69 : vector<8x128xf32>
    %71 = vector.extract_strided_slice %60 {offsets = [8, 0], sizes = [8, 128], strides = [1, 1]} : vector<24x128xf32> to vector<8x128xf32>
    %c1_35 = arith.constant 1 : index
    %c1_36 = arith.constant 1 : index
    %c0_37 = arith.constant 0 : index
    %c0_38 = arith.constant 0 : index
    %72 = vector.load %arg5[%c1_35, %c1_36, %c0_37, %c0_38] : memref<3x2x1x128xf32, #tpu.memory_space<vmem>>, vector<1x1x1x128xf32>
    %73 = vector.shape_cast %72 : vector<1x1x1x128xf32> to vector<1x128xf32>
    %74 = vector.broadcast %73 : vector<1x128xf32> to vector<8x128xf32>
    %75 = arith.addf %71, %74 : vector<8x128xf32>
    %cst_39 = arith.constant 0.000000e+00 : f32
    %76 = vector.broadcast %cst_39 : f32 to vector<8x128xf32>
    %77 = arith.maximumf %75, %76 : vector<8x128xf32>
    %78 = arith.addf %45, %77 : vector<8x128xf32>
    %79 = vector.extract_strided_slice %60 {offsets = [16, 0], sizes = [8, 128], strides = [1, 1]} : vector<24x128xf32> to vector<8x128xf32>
    %c2_40 = arith.constant 2 : index
    %c1_41 = arith.constant 1 : index
    %c0_42 = arith.constant 0 : index
    %c0_43 = arith.constant 0 : index
    %80 = vector.load %arg5[%c2_40, %c1_41, %c0_42, %c0_43] : memref<3x2x1x128xf32, #tpu.memory_space<vmem>>, vector<1x1x1x128xf32>
    %81 = vector.shape_cast %80 : vector<1x1x1x128xf32> to vector<1x128xf32>
    %82 = vector.broadcast %81 : vector<1x128xf32> to vector<8x128xf32>
    %83 = arith.addf %79, %82 : vector<8x128xf32>
    %cst_44 = arith.constant 0.000000e+00 : f32
    %84 = vector.broadcast %cst_44 : f32 to vector<8x128xf32>
    %85 = arith.maximumf %83, %84 : vector<8x128xf32>
    %c0_45 = arith.constant 0 : index
    %c0_46 = arith.constant 0 : index
    %86 = vector.load %arg6[%c0_45, %c0_46] : memref<1x128xbf16, #tpu.memory_space<vmem>>, vector<1x128xbf16>
    %87 = arith.extf %86 : vector<1x128xbf16> to vector<1x128xf32>
    %88 = vector.broadcast %87 : vector<1x128xf32> to vector<8x128xf32>
    %89 = arith.mulf %70, %88 : vector<8x128xf32>
    %cst_47 = arith.constant dense<0.000000e+00> : vector<8xf32>
    %90 = vector.multi_reduction <add>, %89, %cst_47 [1] : vector<8x128xf32> to vector<8xf32>
    %91 = vector.shape_cast %90 : vector<8xf32> to vector<8x1xf32>
    %c0_48 = arith.constant 0 : index
    %c0_49 = arith.constant 0 : index
    %c0_50 = arith.constant 0 : index
    %92 = vector.load %arg7[%c0_48, %c0_49, %c0_50] : memref<2x128x128xbf16, #tpu.memory_space<vmem>>, vector<1x128x128xbf16>
    %93 = vector.shape_cast %92 : vector<1x128x128xbf16> to vector<128x128xbf16>
    %94 = arith.truncf %78 : vector<8x128xf32> to vector<8x128xbf16>
    %cst_51 = arith.constant dense<0.000000e+00> : vector<8x128xf32>
    %95 = tpu.matmul %94, %93, %cst_51 {dimension_numbers = #tpu.dot_dimension_numbers<[1], [0], [0], [1], [0, 0, 1, 1], [], []>} : vector<8x128xbf16>, vector<128x128xbf16>, vector<8x128xf32> -> vector<8x128xf32>
    %c1_52 = arith.constant 1 : index
    %c0_53 = arith.constant 0 : index
    %c0_54 = arith.constant 0 : index
    %96 = vector.load %arg7[%c1_52, %c0_53, %c0_54] : memref<2x128x128xbf16, #tpu.memory_space<vmem>>, vector<1x128x128xbf16>
    %97 = vector.shape_cast %96 : vector<1x128x128xbf16> to vector<128x128xbf16>
    %98 = arith.truncf %85 : vector<8x128xf32> to vector<8x128xbf16>
    %cst_55 = arith.constant dense<0.000000e+00> : vector<8x128xf32>
    %99 = tpu.matmul %98, %97, %cst_55 {dimension_numbers = #tpu.dot_dimension_numbers<[1], [0], [0], [1], [0, 0, 1, 1], [], []>} : vector<8x128xbf16>, vector<128x128xbf16>, vector<8x128xf32> -> vector<8x128xf32>
    %100 = arith.mulf %99, %0 : vector<8x128xf32>
    %101 = arith.addf %95, %100 : vector<8x128xf32>
    %102 = vector.broadcast %91 : vector<8x1xf32> to vector<8x128xf32>
    %103 = arith.mulf %102, %101 : vector<8x128xf32>
    %c0_56 = arith.constant 0 : index
    %c0_57 = arith.constant 0 : index
    %104 = vector.load %arg8[%c0_56, %c0_57] : memref<8x128xf32, #tpu.memory_space<vmem>>, vector<8x128xf32>
    tpu.vector_store %arg8[%c0_56, %c0_57], %103 {strides = array<i32>} : memref<8x128xf32, #tpu.memory_space<vmem>>, vector<8x128xf32>,
    return
  }
  func.func @transform_0(%arg0: i32) -> (i32, i32) {
    %c0_i32 = arith.constant 0 : i32
    %c0_i32_0 = arith.constant 0 : i32
    return %arg0, %c0_i32 : i32, i32
  }
  func.func @transform_1(%arg0: i32) -> (i32, i32) {
    %c0_i32 = arith.constant 0 : i32
    %c0_i32_0 = arith.constant 0 : i32
    %c0_i32_1 = arith.constant 0 : i32
    return %c0_i32, %c0_i32_0 : i32, i32
  }
  func.func @transform_2(%arg0: i32) -> (i32, i32) {
    %c0_i32 = arith.constant 0 : i32
    %c0_i32_0 = arith.constant 0 : i32
    %c0_i32_1 = arith.constant 0 : i32
    return %c0_i32, %c0_i32_0 : i32, i32
  }
  func.func @transform_3(%arg0: i32) -> (i32, i32, i32) {
    %c0_i32 = arith.constant 0 : i32
    %c0_i32_0 = arith.constant 0 : i32
    %c0_i32_1 = arith.constant 0 : i32
    %c0_i32_2 = arith.constant 0 : i32
    return %c0_i32, %c0_i32_0, %c0_i32_1 : i32, i32, i32
  }
  func.func @transform_4(%arg0: i32) -> (i32, i32, i32, i32) {
    %c0_i32 = arith.constant 0 : i32
    %c0_i32_0 = arith.constant 0 : i32
    %c0_i32_1 = arith.constant 0 : i32
    %c0_i32_2 = arith.constant 0 : i32
    %c0_i32_3 = arith.constant 0 : i32
    return %c0_i32, %c0_i32_0, %c0_i32_1, %c0_i32_2 : i32, i32, i32, i32
  }
  func.func @transform_5(%arg0: i32) -> (i32, i32) {
    %c0_i32 = arith.constant 0 : i32
    %c0_i32_0 = arith.constant 0 : i32
    %c0_i32_1 = arith.constant 0 : i32
    return %c0_i32, %c0_i32_0 : i32, i32
  }
  func.func @transform_6(%arg0: i32) -> (i32, i32, i32) {
    %c0_i32 = arith.constant 0 : i32
    %c0_i32_0 = arith.constant 0 : i32
    %c0_i32_1 = arith.constant 0 : i32
    %c0_i32_2 = arith.constant 0 : i32
    return %c0_i32, %c0_i32_0, %c0_i32_1 : i32, i32, i32
  }
  func.func @transform_7(%arg0: i32) -> (i32, i32) {
    %c0_i32 = arith.constant 0 : i32
    %c0_i32_0 = arith.constant 0 : i32
    return %arg0, %c0_i32 : i32, i32
  }
}

</mosaic_0001>

<llo_original>
// kernel: tpu_custom_call.1
$region0: #{tpu_custom_call.1}
  #allocation0 [shape = 'u32[]', space=smem, size = 0x4, offset = 0x4, fixed_abs, tag = 'smem constant byte address 0x4 - core index']
  #allocation1 [shape = 'u32[144,128]{1,0:T(1,128)}', space=vmem, size = 0x12000, scoped, tag = 'internal scratch']
  %s0 = inlined_call_operand.hbm [shape: f32[8,128], index: 0, kind: input, shape index: {}]
  %s1 = inlined_call_operand.hbm [shape: bf16[128,384], index: 1, kind: input, shape index: {}]
  %s2 = inlined_call_operand.vmem [shape: f32[1,384], index: 2, kind: input, shape index: {}]
  %s3 = inlined_call_operand.hbm [shape: bf16[2,384,128], index: 3, kind: input, shape index: {}]
  %s4 = inlined_call_operand.vmem [shape: f32[3,2,1,128], index: 4, kind: input, shape index: {}]
  %s5 = inlined_call_operand.vmem [shape: bf16[1,128], index: 5, kind: input, shape index: {}]
  %s6 = inlined_call_operand.hbm [shape: bf16[2,128,128], index: 6, kind: input, shape index: {}]
  %s7 = inlined_call_operand.hbm [shape: f32[8,128], index: 7, kind: output, shape index: {}]
  %s8 = sld [smem:[#allocation0]]
  $region54: #{tpu_custom_call.1} parent=0
    _
  %s10 = ssub.s32 1, %s8
  %s11 = scalar_select 0, %s10, %s8
  $region1: #{tpu_custom_call.1} parent=0
    #allocation2 [shape = 'u8[4096]{0}', space=vmem, size = 0x1000, scoped, tag = 'input window, operand 0, single buffered']
    #allocation3 [shape = 's32[1]{0}', space=sflag, size = 0x4, scoped, tag = 'scoped memory for tpu_custom_call.1']
    #allocation4 [shape = 's32[1]{0}', space=sflag, size = 0x4, scoped, tag = 'scoped memory for tpu_custom_call.1']
    #allocation5 [shape = 'u8[98304]{0}', space=vmem, size = 0x18000, scoped, tag = 'input window, operand 1, single buffered']
    #allocation6 [shape = 's32[1]{0}', space=sflag, size = 0x4, scoped, tag = 'scoped memory for tpu_custom_call.1']
    #allocation7 [shape = 'u8[196608]{0}', space=vmem, size = 0x30000, scoped, tag = 'input window, operand 3, single buffered']
    #allocation8 [shape = 'u8[65536]{0}', space=vmem, size = 0x10000, scoped, tag = 'input window, operand 6, single buffered']
    #allocation9 [shape = 's32[1]{0}', space=sflag, size = 0x4, scoped, tag = 'scoped memory for tpu_custom_call.1']
    #allocation10 [shape = 'u8[4096]{0}', space=vmem, size = 0x1000, scoped, tag = 'output window, operand 0, single buffered']
    %12 = vsyncpa [#allocation3], 0
    %13 = vsyncpa [#allocation6], 0
    %14 = vsyncpa [#allocation9], 0
    %15 = vsyncpa [#allocation4], 0
    // Predicated region
    $region2: #{tpu_custom_call.1} parent=1 // pred_check
      _
    $region3: #{tpu_custom_call.1} parent=1 // pred_check_branch
      %17 = sbr.rel (0) target = $region5
    $region4: #{tpu_custom_call.1} parent=1 // pred_region
      %s19 = ssub.s32 128, 128
      %20 = vsyncadd [#allocation3], %s19
      %s22 = sshll.u32 [#allocation2], 4
      %s23 = int_to_ptr.vmem [resolvable:$true] %s22
      %25 = dma.hbm_to_vmem [thread:$0]  %s0, 128, %s23, [#allocation3]
    $region5: #{tpu_custom_call.1} parent=1 // pred_fallthru
      _
    // Predicated region
    $region6: #{tpu_custom_call.1} parent=1 // pred_check
      _
    $region7: #{tpu_custom_call.1} parent=1 // pred_check_branch
      %27 = sbr.rel (0) target = $region9
    $region8: #{tpu_custom_call.1} parent=1 // pred_region
      %s29 = ssub.s32 3072, 3072
      %30 = vsyncadd [#allocation6], %s29
      %s31 = sshll.u32 [#allocation5], 4
      %s32 = int_to_ptr.vmem [resolvable:$true] %s31
      %37 = dma.hbm_to_vmem [thread:$0]  %s1, 3072, %s32, [#allocation6], 192, 192, 12
    $region9: #{tpu_custom_call.1} parent=1 // pred_fallthru
      _
    // Predicated region
    $region10: #{tpu_custom_call.1} parent=1 // pred_check
      _
    $region11: #{tpu_custom_call.1} parent=1 // pred_check_branch
      %39 = sbr.rel (0) target = $region13
    $region12: #{tpu_custom_call.1} parent=1 // pred_region
      _
    $region13: #{tpu_custom_call.1} parent=1 // pred_fallthru
      _
    // Predicated region
    $region14: #{tpu_custom_call.1} parent=1 // pred_check
      _
    $region15: #{tpu_custom_call.1} parent=1 // pred_check_branch
      %41 = sbr.rel (0) target = $region17
    $region16: #{tpu_custom_call.1} parent=1 // pred_region
      %s43 = ssub.s32 6144, 6144
      %44 = vsyncadd [#allocation6], %s43
      %s45 = sshll.u32 [#allocation7], 4
      %s46 = int_to_ptr.vmem [resolvable:$true] %s45
      %51 = dma.hbm_to_vmem [thread:$0]  %s3, 6144, %s46, [#allocation6], 64, 64, 4
    $region17: #{tpu_custom_call.1} parent=1 // pred_fallthru
      _
    // Predicated region
    $region18: #{tpu_custom_call.1} parent=1 // pred_check
      _
    $region19: #{tpu_custom_call.1} parent=1 // pred_check_branch
      %53 = sbr.rel (0) target = $region21
    $region20: #{tpu_custom_call.1} parent=1 // pred_region
      _
    $region21: #{tpu_custom_call.1} parent=1 // pred_fallthru
      _
    // Predicated region
    $region22: #{tpu_custom_call.1} parent=1 // pred_check
      _
    $region23: #{tpu_custom_call.1} parent=1 // pred_check_branch
      %55 = sbr.rel (0) target = $region25
    $region24: #{tpu_custom_call.1} parent=1 // pred_region
      _
    $region25: #{tpu_custom_call.1} parent=1 // pred_fallthru
      _
    // Predicated region
    $region26: #{tpu_custom_call.1} parent=1 // pred_check
      _
    $region27: #{tpu_custom_call.1} parent=1 // pred_check_branch
      %57 = sbr.rel (0) target = $region29
    $region28: #{tpu_custom_call.1} parent=1 // pred_region
      %s59 = ssub.s32 2048, 2048
      %60 = vsyncadd [#allocation9], %s59
      %s61 = sshll.u32 [#allocation8], 4
      %s62 = int_to_ptr.vmem [resolvable:$true] %s61
      %67 = dma.hbm_to_vmem [thread:$0]  %s6, 2048, %s62, [#allocation9], 64, 64, 4
    $region29: #{tpu_custom_call.1} parent=1 // pred_fallthru
      _
    // Predicated region
    $region30: #{tpu_custom_call.1} parent=1 // pred_check
      _
    $region31: #{tpu_custom_call.1} parent=1 // pred_check_branch
      %69 = sbr.rel (0) target = $region33
    $region32: #{tpu_custom_call.1} parent=1 // pred_region
      %70 = dma.done [#allocation3], 128
    $region33: #{tpu_custom_call.1} parent=1 // pred_fallthru
      _
    // Predicated region
    $region34: #{tpu_custom_call.1} parent=1 // pred_check
      _
    $region35: #{tpu_custom_call.1} parent=1 // pred_check_branch
      %72 = sbr.rel (0) target = $region37
    $region36: #{tpu_custom_call.1} parent=1 // pred_region
      %73 = dma.done [#allocation6], 3072
    $region37: #{tpu_custom_call.1} parent=1 // pred_fallthru
      _
    // Predicated region
    $region38: #{tpu_custom_call.1} parent=1 // pred_check
      _
    $region39: #{tpu_custom_call.1} parent=1 // pred_check_branch
      %75 = sbr.rel (0) target = $region41
    $region40: #{tpu_custom_call.1} parent=1 // pred_region
      %76 = dma.done [#allocation6], 6144
    $region41: #{tpu_custom_call.1} parent=1 // pred_fallthru
      _
    // Predicated region
    $region42: #{tpu_custom_call.1} parent=1 // pred_check
      _
    $region43: #{tpu_custom_call.1} parent=1 // pred_check_branch
      %78 = sbr.rel (0) target = $region45
    $region44: #{tpu_custom_call.1} parent=1 // pred_region
      %79 = dma.done [#allocation9], 2048
    $region45: #{tpu_custom_call.1} parent=1 // pred_fallthru
      _
    %v81 = vld [vmem:[#allocation2] sm:$0xff]
    %v82 = vld [vmem:[#allocation5] sm:$0xff]
    %v83 = vld [vmem:[#allocation5 + $0x8] sm:$0xf]
    %v84 = vld [vmem:[#allocation5 + $0xc] sm:$0xff]
    %v85 = vld [vmem:[#allocation5 + $0x14] sm:$0xf]
    %v86 = vld [vmem:[#allocation5 + $0x18] sm:$0xff]
    %v87 = vld [vmem:[#allocation5 + $0x20] sm:$0xf]
    %v88 = vld [vmem:[#allocation5 + $0x24] sm:$0xff]
    %v89 = vld [vmem:[#allocation5 + $0x2c] sm:$0xf]
    %v90 = vld [vmem:[#allocation5 + $0x30] sm:$0xff]
    %v91 = vld [vmem:[#allocation5 + $0x38] sm:$0xf]
    %v92 = vld [vmem:[#allocation5 + $0x3c] sm:$0xff]
    %v93 = vld [vmem:[#allocation5 + $0x44] sm:$0xf]
    %v94 = vld [vmem:[#allocation5 + $0x48] sm:$0xff]
    %v95 = vld [vmem:[#allocation5 + $0x50] sm:$0xf]
    %v96 = vld [vmem:[#allocation5 + $0x54] sm:$0xff]
    %v97 = vld [vmem:[#allocation5 + $0x5c] sm:$0xf]
    %v98 = vld [vmem:[#allocation5 + $0x60] sm:$0xff]
    %v99 = vld [vmem:[#allocation5 + $0x68] sm:$0xf]
    %v100 = vld [vmem:[#allocation5 + $0x6c] sm:$0xff]
    %v101 = vld [vmem:[#allocation5 + $0x74] sm:$0xf]
    %v102 = vld [vmem:[#allocation5 + $0x78] sm:$0xff]
    %v103 = vld [vmem:[#allocation5 + $0x80] sm:$0xf]
    %v104 = vld [vmem:[#allocation5 + $0x84] sm:$0xff]
    %v105 = vld [vmem:[#allocation5 + $0x8c] sm:$0xf]
    %v106 = vld [vmem:[#allocation5 + $0x90] sm:$0xff]
    %v107 = vld [vmem:[#allocation5 + $0x98] sm:$0xf]
    %v108 = vld [vmem:[#allocation5 + $0x9c] sm:$0xff]
    %v109 = vld [vmem:[#allocation5 + $0xa4] sm:$0xf]
    %v110 = vld [vmem:[#allocation5 + $0xa8] sm:$0xff]
    %v111 = vld [vmem:[#allocation5 + $0xb0] sm:$0xf]
    %v112 = vld [vmem:[#allocation5 + $0xb4] sm:$0xff]
    %v113 = vld [vmem:[#allocation5 + $0xbc] sm:$0xf]
    %v114 = vpack.c.bf16 %v81, %v81
    %v115 = vld [vmem:[%s2] sm:$0x7]
    %v117 = vlaneseq
    %v118 = vshrl.u32 %v117, 7
    %v119 = vsub.s32 0, %v118
    %v120 = vrot.slane %v115, %v119
    %v121 = vlaneseq
    %v122 = vshrl.u32 %v121, 7
    %v123 = vsub.s32 1, %v122
    %v124 = vrot.slane %v115, %v123
    %v125 = vlaneseq
    %v126 = vshrl.u32 %v125, 7
    %v127 = vsub.s32 2, %v126
    %v128 = vrot.slane %v115, %v127
    %v164 = vunpack.c.l.b16 %v82
    %v165 = vunpack.c.h.b16 %v82
    %v166 = vunpack.c.l.b16 %v83
    %v167 = vunpack.c.l.b16 %v84
    %v168 = vunpack.c.h.b16 %v84
    %v169 = vunpack.c.l.b16 %v85
    %v170 = vunpack.c.l.b16 %v86
    %v171 = vunpack.c.h.b16 %v86
    %v172 = vunpack.c.l.b16 %v87
    %v173 = vunpack.c.l.b16 %v88
    %v174 = vunpack.c.h.b16 %v88
    %v175 = vunpack.c.l.b16 %v89
    %v176 = vunpack.c.l.b16 %v90
    %v177 = vunpack.c.h.b16 %v90
    %v178 = vunpack.c.l.b16 %v91
    %v179 = vunpack.c.l.b16 %v92
    %v180 = vunpack.c.h.b16 %v92
    %v181 = vunpack.c.l.b16 %v93
    %v182 = vunpack.c.l.b16 %v94
    %v183 = vunpack.c.h.b16 %v94
    %v184 = vunpack.c.l.b16 %v95
    %v185 = vunpack.c.l.b16 %v96
    %v186 = vunpack.c.h.b16 %v96
    %v187 = vunpack.c.l.b16 %v97
    %v188 = vunpack.c.l.b16 %v98
    %v189 = vunpack.c.h.b16 %v98
    %v190 = vunpack.c.l.b16 %v99
    %v191 = vunpack.c.l.b16 %v100
    %v192 = vunpack.c.h.b16 %v100
    %v193 = vunpack.c.l.b16 %v101
    %v194 = vunpack.c.l.b16 %v102
    %v195 = vunpack.c.h.b16 %v102
    %v196 = vunpack.c.l.b16 %v103
    %v197 = vunpack.c.l.b16 %v104
    %v198 = vunpack.c.h.b16 %v104
    %v199 = vunpack.c.l.b16 %v105
    %v200 = vunpack.c.l.b16 %v106
    %v201 = vunpack.c.h.b16 %v106
    %v202 = vunpack.c.l.b16 %v107
    %v203 = vunpack.c.l.b16 %v108
    %v204 = vunpack.c.h.b16 %v108
    %v205 = vunpack.c.l.b16 %v109
    %v206 = vunpack.c.l.b16 %v110
    %v207 = vunpack.c.h.b16 %v110
    %v208 = vunpack.c.l.b16 %v111
    %v209 = vunpack.c.l.b16 %v112
    %v210 = vunpack.c.h.b16 %v112
    %v211 = vunpack.c.l.b16 %v113
    %v212 = vpack.c.b16 %v167, %v164
    %v213 = vpack.c.b16 %v168, %v165
    %v214 = vpack.c.b16 %v169, %v166
    %v215 = vpack.c.b16 %v173, %v170
    %v216 = vpack.c.b16 %v174, %v171
    %v217 = vpack.c.b16 %v175, %v172
    %v218 = vpack.c.b16 %v179, %v176
    %v219 = vpack.c.b16 %v180, %v177
    %v220 = vpack.c.b16 %v181, %v178
    %v221 = vpack.c.b16 %v185, %v182
    %v222 = vpack.c.b16 %v186, %v183
    %v223 = vpack.c.b16 %v187, %v184
    %v224 = vpack.c.b16 %v191, %v188
    %v225 = vpack.c.b16 %v192, %v189
    %v226 = vpack.c.b16 %v193, %v190
    %v227 = vpack.c.b16 %v197, %v194
    %v228 = vpack.c.b16 %v198, %v195
    %v229 = vpack.c.b16 %v199, %v196
    %v230 = vpack.c.b16 %v203, %v200
    %v231 = vpack.c.b16 %v204, %v201
    %v232 = vpack.c.b16 %v205, %v202
    %v233 = vpack.c.b16 %v209, %v206
    %v234 = vpack.c.b16 %v210, %v207
    %v235 = vpack.c.b16 %v211, %v208
    %260 = vmatprep.subr.bf16.mxu0 %v213
    %261 = vmatpush1.bf16.msra.mxu0 %v212
    %262 = vmatprep.subr.bf16.mxu0 %v216
    %263 = vmatpush1.bf16.msra.mxu0 %v215
    %264 = vmatprep.subr.bf16.mxu0 %v219
    %265 = vmatpush1.bf16.msra.mxu0 %v218
    %266 = vmatprep.subr.bf16.mxu0 %v222
    %267 = vmatpush1.bf16.msra.mxu0 %v221
    %268 = vmatprep.subr.bf16.mxu0 %v225
    %269 = vmatpush1.bf16.msra.mxu0 %v224
    %270 = vmatprep.subr.bf16.mxu0 %v228
    %271 = vmatpush1.bf16.msra.mxu0 %v227
    %272 = vmatprep.subr.bf16.mxu0 %v231
    %273 = vmatpush1.bf16.msra.mxu0 %v230
    %274 = vmatprep.subr.bf16.mxu0 %v234
    %275 = vmatpush1.bf16.msra.mxu0 %v233
    %276 = vmatprep.subr.bf16.mxu0 0
    %277 = vmatpush1.bf16.msra.mxu0 0
    %278 = vmatprep.subr.bf16.mxu0 0
    %279 = vmatpush1.bf16.msra.mxu0 0
    %280 = vmatprep.subr.bf16.mxu0 0
    %281 = vmatpush1.bf16.msra.mxu0 0
    %282 = vmatprep.subr.bf16.mxu0 0
    %283 = vmatpush1.bf16.msra.mxu0 0
    %284 = vmatprep.subr.bf16.mxu0 0
    %285 = vmatpush1.bf16.msra.mxu0 0
    %286 = vmatprep.subr.bf16.mxu0 0
    %287 = vmatpush1.bf16.msra.mxu0 0
    %288 = vmatprep.subr.bf16.mxu0 0
    %289 = vmatpush1.bf16.msra.mxu0 0
    %290 = vmatprep.subr.bf16.mxu0 0
    %291 = vmatpush1.bf16.msra.mxu0 0
    %292 = vmatprep.mubr.bf16.mxu0 0
    %293 = vmatmul.mubr.bf16.gmra.mrb[0].mxu0 %v114
    %v294 = vpop.f32.mrb[0].mxu0
    %v295 = vadd.f32 %v120, %v294
    %v296 = vpop.f32.mrb[0].mxu0
    %v297 = vadd.f32 %v124, %v296
    %v298 = vpop.f32.mrb[0].mxu0
    %v299 = vpop.f32.mrb[0].mxu0
    %300 = vdwg.mxu0
    %301 = vmatprep.subr.bf16.mxu0 0
    %302 = vmatpush1.bf16.msra.mxu0 %v214
    %303 = vmatprep.subr.bf16.mxu0 0
    %304 = vmatpush1.bf16.msra.mxu0 %v217
    %305 = vmatprep.subr.bf16.mxu0 0
    %306 = vmatpush1.bf16.msra.mxu0 %v220
    %307 = vmatprep.subr.bf16.mxu0 0
    %308 = vmatpush1.bf16.msra.mxu0 %v223
    %309 = vmatprep.subr.bf16.mxu0 0
    %310 = vmatpush1.bf16.msra.mxu0 %v226
    %311 = vmatprep.subr.bf16.mxu0 0
    %312 = vmatpush1.bf16.msra.mxu0 %v229
    %313 = vmatprep.subr.bf16.mxu0 0
    %314 = vmatpush1.bf16.msra.mxu0 %v232
    %315 = vmatprep.subr.bf16.mxu0 0
    %316 = vmatpush1.bf16.msra.mxu0 %v235
    %317 = vmatprep.subr.bf16.mxu0 0
    %318 = vmatpush1.bf16.msra.mxu0 0
    %319 = vmatprep.subr.bf16.mxu0 0
    %320 = vmatpush1.bf16.msra.mxu0 0
    %321 = vmatprep.subr.bf16.mxu0 0
    %322 = vmatpush1.bf16.msra.mxu0 0
    %323 = vmatprep.subr.bf16.mxu0 0
    %324 = vmatpush1.bf16.msra.mxu0 0
    %325 = vmatprep.subr.bf16.mxu0 0
    %326 = vmatpush1.bf16.msra.mxu0 0
    %327 = vmatprep.subr.bf16.mxu0 0
    %328 = vmatpush1.bf16.msra.mxu0 0
    %329 = vmatprep.subr.bf16.mxu0 0
    %330 = vmatpush1.bf16.msra.mxu0 0
    %331 = vmatprep.subr.bf16.mxu0 0
    %332 = vmatpush1.bf16.msra.mxu0 0
    %333 = vmatprep.mubr.bf16.mxu0 0
    %334 = vmatmul.mubr.bf16.gmra.mrb[0].mxu0 %v114
    %v335 = vpop.f32.mrb[0].mxu0
    %v336 = vadd.f32 %v128, %v335
    %v337 = vpop.f32.mrb[0].mxu0
    %v338 = vpop.f32.mrb[0].mxu0
    %v339 = vpop.f32.mrb[0].mxu0
    %340 = vdwg.mxu0
    %v341 = vxor.u32 %v295, 2147483648
    %v342 = vmul.f32 %v341, 1.442695
    %v343 = vpow.pop %v342
    %v344 = vadd.f32 %v343, 1.0
    %v345 = vrcp.pop %v344
    %v346 = vmul.f32 1.0, %v345
    %v347 = vmax.f32 %v297, 0.0
    %v348 = vmax.f32 %v336, 0.0
    %v349 = vld [vmem:[#allocation7] sm:$0xf]
    %v350 = vld [vmem:[#allocation7 + $0x4] sm:$0xf]
    %v351 = vld [vmem:[#allocation7 + $0x8] sm:$0xf]
    %v352 = vld [vmem:[#allocation7 + $0xc] sm:$0xf]
    %v353 = vld [vmem:[#allocation7 + $0x10] sm:$0xf]
    %v354 = vld [vmem:[#allocation7 + $0x14] sm:$0xf]
    %v355 = vld [vmem:[#allocation7 + $0x18] sm:$0xf]
    %v356 = vld [vmem:[#allocation7 + $0x1c] sm:$0xf]
    %v357 = vld [vmem:[#allocation7 + $0x20] sm:$0xf]
    %v358 = vld [vmem:[#allocation7 + $0x24] sm:$0xf]
    %v359 = vld [vmem:[#allocation7 + $0x28] sm:$0xf]
    %v360 = vld [vmem:[#allocation7 + $0x2c] sm:$0xf]
    %v361 = vld [vmem:[#allocation7 + $0x30] sm:$0xf]
    %v362 = vld [vmem:[#allocation7 + $0x34] sm:$0xf]
    %v363 = vld [vmem:[#allocation7 + $0x38] sm:$0xf]
    %v364 = vld [vmem:[#allocation7 + $0x3c] sm:$0xf]
    %v365 = vld [vmem:[#allocation7 + $0x40] sm:$0xf]
    %v366 = vld [vmem:[#allocation7 + $0x44] sm:$0xf]
    %v367 = vld [vmem:[#allocation7 + $0x48] sm:$0xf]
    %v368 = vld [vmem:[#allocation7 + $0x4c] sm:$0xf]
    %v369 = vld [vmem:[#allocation7 + $0x50] sm:$0xf]
    %v370 = vld [vmem:[#allocation7 + $0x54] sm:$0xf]
    %v371 = vld [vmem:[#allocation7 + $0x58] sm:$0xf]
    %v372 = vld [vmem:[#allocation7 + $0x5c] sm:$0xf]
    %v373 = vld [vmem:[#allocation7 + $0x60] sm:$0xf]
    %v374 = vld [vmem:[#allocation7 + $0x64] sm:$0xf]
    %v375 = vld [vmem:[#allocation7 + $0x68] sm:$0xf]
    %v376 = vld [vmem:[#allocation7 + $0x6c] sm:$0xf]
    %v377 = vld [vmem:[#allocation7 + $0x70] sm:$0xf]
    %v378 = vld [vmem:[#allocation7 + $0x74] sm:$0xf]
    %v379 = vld [vmem:[#allocation7 + $0x78] sm:$0xf]
    %v380 = vld [vmem:[#allocation7 + $0x7c] sm:$0xf]
    %v381 = vld [vmem:[#allocation7 + $0x80] sm:$0xf]
    %v382 = vld [vmem:[#allocation7 + $0x84] sm:$0xf]
    %v383 = vld [vmem:[#allocation7 + $0x88] sm:$0xf]
    %v384 = vld [vmem:[#allocation7 + $0x8c] sm:$0xf]
    %v385 = vld [vmem:[#allocation7 + $0x90] sm:$0xf]
    %v386 = vld [vmem:[#allocation7 + $0x94] sm:$0xf]
    %v387 = vld [vmem:[#allocation7 + $0x98] sm:$0xf]
    %v388 = vld [vmem:[#allocation7 + $0x9c] sm:$0xf]
    %v389 = vld [vmem:[#allocation7 + $0xa0] sm:$0xf]
    %v390 = vld [vmem:[#allocation7 + $0xa4] sm:$0xf]
    %v391 = vld [vmem:[#allocation7 + $0xa8] sm:$0xf]
    %v392 = vld [vmem:[#allocation7 + $0xac] sm:$0xf]
    %v393 = vld [vmem:[#allocation7 + $0xb0] sm:$0xf]
    %v394 = vld [vmem:[#allocation7 + $0xb4] sm:$0xf]
    %v395 = vld [vmem:[#allocation7 + $0xb8] sm:$0xf]
    %v396 = vld [vmem:[#allocation7 + $0xbc] sm:$0xf]
    %v397 = vpack.c.bf16 0.0, %v346
    %v398 = vpack.c.bf16 %v347, 0.0
    %v399 = vpack.c.bf16 0.0, 0.0
    %v400 = vpack.c.bf16 %v348, %v348
    %v449 = vunpack.c.l.b16 %v349
    %v450 = vunpack.c.l.b16 %v350
    %v451 = vunpack.c.l.b16 %v351
    %v452 = vunpack.c.l.b16 %v352
    %v453 = vunpack.c.l.b16 %v353
    %v454 = vunpack.c.l.b16 %v354
    %v455 = vunpack.c.l.b16 %v355
    %v456 = vunpack.c.l.b16 %v356
    %v457 = vunpack.c.l.b16 %v357
    %v458 = vunpack.c.l.b16 %v358
    %v459 = vunpack.c.l.b16 %v359
    %v460 = vunpack.c.l.b16 %v360
    %v461 = vunpack.c.l.b16 %v361
    %v462 = vunpack.c.l.b16 %v362
    %v463 = vunpack.c.l.b16 %v363
    %v464 = vunpack.c.l.b16 %v364
    %v465 = vunpack.c.l.b16 %v365
    %v466 = vunpack.c.l.b16 %v366
    %v467 = vunpack.c.l.b16 %v367
    %v468 = vunpack.c.l.b16 %v368
    %v469 = vunpack.c.l.b16 %v369
    %v470 = vunpack.c.l.b16 %v370
    %v471 = vunpack.c.l.b16 %v371
    %v472 = vunpack.c.l.b16 %v372
    %v473 = vunpack.c.l.b16 %v373
    %v474 = vunpack.c.l.b16 %v374
    %v475 = vunpack.c.l.b16 %v375
    %v476 = vunpack.c.l.b16 %v376
    %v477 = vunpack.c.l.b16 %v377
    %v478 = vunpack.c.l.b16 %v378
    %v479 = vunpack.c.l.b16 %v379
    %v480 = vunpack.c.l.b16 %v380
    %v481 = vunpack.c.l.b16 %v381
    %v482 = vunpack.c.l.b16 %v382
    %v483 = vunpack.c.l.b16 %v383
    %v484 = vunpack.c.l.b16 %v384
    %v485 = vunpack.c.l.b16 %v385
    %v486 = vunpack.c.l.b16 %v386
    %v487 = vunpack.c.l.b16 %v387
    %v488 = vunpack.c.l.b16 %v388
    %v489 = vunpack.c.l.b16 %v389
    %v490 = vunpack.c.l.b16 %v390
    %v491 = vunpack.c.l.b16 %v391
    %v492 = vunpack.c.l.b16 %v392
    %v493 = vunpack.c.l.b16 %v393
    %v494 = vunpack.c.l.b16 %v394
    %v495 = vunpack.c.l.b16 %v395
    %v496 = vunpack.c.l.b16 %v396
    %v497 = vpack.c.b16 %v450, %v449
    %v498 = vpack.c.b16 %v452, %v451
    %v499 = vpack.c.b16 %v454, %v453
    %v500 = vpack.c.b16 %v456, %v455
    %v501 = vpack.c.b16 %v458, %v457
    %v502 = vpack.c.b16 %v460, %v459
    %v503 = vpack.c.b16 %v462, %v461
    %v504 = vpack.c.b16 %v464, %v463
    %v505 = vpack.c.b16 %v466, %v465
    %v506 = vpack.c.b16 %v468, %v467
    %v507 = vpack.c.b16 %v470, %v469
    %v508 = vpack.c.b16 %v472, %v471
    %v509 = vpack.c.b16 %v474, %v473
    %v510 = vpack.c.b16 %v476, %v475
    %v511 = vpack.c.b16 %v478, %v477
    %v512 = vpack.c.b16 %v480, %v479
    %v513 = vpack.c.b16 %v482, %v481
    %v514 = vpack.c.b16 %v484, %v483
    %v515 = vpack.c.b16 %v486, %v485
    %v516 = vpack.c.b16 %v488, %v487
    %v517 = vpack.c.b16 %v490, %v489
    %v518 = vpack.c.b16 %v492, %v491
    %v519 = vpack.c.b16 %v494, %v493
    %v520 = vpack.c.b16 %v496, %v495
    %545 = vmatprep.subr.bf16.mxu0 0
    %546 = vmatpush1.bf16.msra.mxu0 %v497
    %547 = vmatprep.subr.bf16.mxu0 0
    %548 = vmatpush1.bf16.msra.mxu0 %v498
    %549 = vmatprep.subr.bf16.mxu0 0
    %550 = vmatpush1.bf16.msra.mxu0 %v499
    %551 = vmatprep.subr.bf16.mxu0 0
    %552 = vmatpush1.bf16.msra.mxu0 %v500
    %553 = vmatprep.subr.bf16.mxu0 0
    %554 = vmatpush1.bf16.msra.mxu0 %v501
    %555 = vmatprep.subr.bf16.mxu0 0
    %556 = vmatpush1.bf16.msra.mxu0 %v502
    %557 = vmatprep.subr.bf16.mxu0 0
    %558 = vmatpush1.bf16.msra.mxu0 %v503
    %559 = vmatprep.subr.bf16.mxu0 0
    %560 = vmatpush1.bf16.msra.mxu0 %v504
    %561 = vmatprep.subr.bf16.mxu0 0
    %562 = vmatpush1.bf16.msra.mxu0 %v505
    %563 = vmatprep.subr.bf16.mxu0 0
    %564 = vmatpush1.bf16.msra.mxu0 %v506
    %565 = vmatprep.subr.bf16.mxu0 0
    %566 = vmatpush1.bf16.msra.mxu0 %v507
    %567 = vmatprep.subr.bf16.mxu0 0
    %568 = vmatpush1.bf16.msra.mxu0 %v508
    %569 = vmatprep.subr.bf16.mxu0 0
    %570 = vmatpush1.bf16.msra.mxu0 %v509
    %571 = vmatprep.subr.bf16.mxu0 0
    %572 = vmatpush1.bf16.msra.mxu0 %v510
    %573 = vmatprep.subr.bf16.mxu0 0
    %574 = vmatpush1.bf16.msra.mxu0 %v511
    %575 = vmatprep.subr.bf16.mxu0 0
    %576 = vmatpush1.bf16.msra.mxu0 %v512
    %577 = vmatprep.mubr.bf16.mxu0 %v398
    %578 = vmatmul.mubr.bf16.gmra.mrb[0].mxu0 %v397
    %v579 = vpop.f32.mrb[0].mxu0
    %v580 = vadd.f32 0.0, %v579
    %v581 = vpop.f32.mrb[0].mxu0
    %v582 = vpop.f32.mrb[0].mxu0
    %v583 = vadd.f32 0.0, %v582
    %v584 = vpop.f32.mrb[0].mxu0
    %585 = vmatprep.mubr.bf16.mxu0 %v399
    %586 = vmatmul.mubr.bf16.gmra.mrb[0].mxu0 %v399
    %v587 = vpop.f32.mrb[0].mxu0
    %v588 = vadd.f32 0.0, %v587
    %v589 = vpop.f32.mrb[0].mxu0
    %v590 = vpop.f32.mrb[0].mxu0
    %v591 = vpop.f32.mrb[0].mxu0
    %592 = vdwg.mxu0
    %593 = vmatprep.subr.bf16.mxu0 0
    %594 = vmatpush1.bf16.msra.mxu0 %v513
    %595 = vmatprep.subr.bf16.mxu0 0
    %596 = vmatpush1.bf16.msra.mxu0 %v514
    %597 = vmatprep.subr.bf16.mxu0 0
    %598 = vmatpush1.bf16.msra.mxu0 %v515
    %599 = vmatprep.subr.bf16.mxu0 0
    %600 = vmatpush1.bf16.msra.mxu0 %v516
    %601 = vmatprep.subr.bf16.mxu0 0
    %602 = vmatpush1.bf16.msra.mxu0 %v517
    %603 = vmatprep.subr.bf16.mxu0 0
    %604 = vmatpush1.bf16.msra.mxu0 %v518
    %605 = vmatprep.subr.bf16.mxu0 0
    %606 = vmatpush1.bf16.msra.mxu0 %v519
    %607 = vmatprep.subr.bf16.mxu0 0
    %608 = vmatpush1.bf16.msra.mxu0 %v520
    %609 = vmatprep.subr.bf16.mxu0 0
    %610 = vmatpush1.bf16.msra.mxu0 0
    %611 = vmatprep.subr.bf16.mxu0 0
    %612 = vmatpush1.bf16.msra.mxu0 0
    %613 = vmatprep.subr.bf16.mxu0 0
    %614 = vmatpush1.bf16.msra.mxu0 0
    %615 = vmatprep.subr.bf16.mxu0 0
    %616 = vmatpush1.bf16.msra.mxu0 0
    %617 = vmatprep.subr.bf16.mxu0 0
    %618 = vmatpush1.bf16.msra.mxu0 0
    %619 = vmatprep.subr.bf16.mxu0 0
    %620 = vmatpush1.bf16.msra.mxu0 0
    %621 = vmatprep.subr.bf16.mxu0 0
    %622 = vmatpush1.bf16.msra.mxu0 0
    %623 = vmatprep.subr.bf16.mxu0 0
    %624 = vmatpush1.bf16.msra.mxu0 0
    %625 = vmatprep.mubr.bf16.mxu0 0
    %626 = vmatmul.mubr.bf16.gmra.mrb[0].mxu0 %v399
    %v627 = vpop.f32.mrb[0].mxu0
    %v628 = vadd.f32 %v580, %v627
    %v629 = vpop.f32.mrb[0].mxu0
    %v630 = vpop.f32.mrb[0].mxu0
    %v631 = vadd.f32 %v583, %v630
    %v632 = vpop.f32.mrb[0].mxu0
    %633 = vmatprep.mubr.bf16.mxu0 0
    %634 = vmatmul.mubr.bf16.gmra.mrb[0].mxu0 %v400
    %v635 = vpop.f32.mrb[0].mxu0
    %v636 = vadd.f32 %v588, %v635
    %v637 = vpop.f32.mrb[0].mxu0
    %v638 = vpop.f32.mrb[0].mxu0
    %v639 = vpop.f32.mrb[0].mxu0
    %640 = vdwg.mxu0
    %v641 = vld [vmem:[%s4] sm:$0x1]
    %v643 = vlaneseq
    %v644 = vshrl.u32 %v643, 7
    %v645 = vsub.s32 0, %v644
    %v646 = vrot.slane %v641, %v645
    %v648 = vadd.f32 %v628, %v646
    %v649 = vxor.u32 %v648, 2147483648
    %v650 = vmul.f32 %v649, 1.442695
    %v651 = vpow.pop %v650
    %v652 = vadd.f32 %v651, 1.0
    %v653 = vrcp.pop %v652
    %v654 = vmul.f32 1.0, %v653
    %s655 = scalar_lea.vmem %s4, 2
    %v656 = vld [vmem:[%s655] sm:$0x1]
    %v658 = vlaneseq
    %v659 = vshrl.u32 %v658, 7
    %v660 = vsub.s32 0, %v659
    %v661 = vrot.slane %v656, %v660
    %v663 = vadd.f32 %v631, %v661
    %v664 = vmax.f32 %v663, 0.0
    %v665 = vadd.f32 %v347, %v664
    %s666 = scalar_lea.vmem %s4, 4
    %v667 = vld [vmem:[%s666] sm:$0x1]
    %v669 = vlaneseq
    %v670 = vshrl.u32 %v669, 7
    %v671 = vsub.s32 0, %v670
    %v672 = vrot.slane %v667, %v671
    %v674 = vadd.f32 %v636, %v672
    %v675 = vmax.f32 %v674, 0.0
    %s676 = scalar_lea.vmem [#allocation7], 192
    %v677 = vld [vmem:[%s676] sm:$0xf]
    %v678 = vld [vmem:[%s676 + $0x4] sm:$0xf]
    %v679 = vld [vmem:[%s676 + $0x8] sm:$0xf]
    %v680 = vld [vmem:[%s676 + $0xc] sm:$0xf]
    %v681 = vld [vmem:[%s676 + $0x10] sm:$0xf]
    %v682 = vld [vmem:[%s676 + $0x14] sm:$0xf]
    %v683 = vld [vmem:[%s676 + $0x18] sm:$0xf]
    %v684 = vld [vmem:[%s676 + $0x1c] sm:$0xf]
    %v685 = vld [vmem:[%s676 + $0x20] sm:$0xf]
    %v686 = vld [vmem:[%s676 + $0x24] sm:$0xf]
    %v687 = vld [vmem:[%s676 + $0x28] sm:$0xf]
    %v688 = vld [vmem:[%s676 + $0x2c] sm:$0xf]
    %v689 = vld [vmem:[%s676 + $0x30] sm:$0xf]
    %v690 = vld [vmem:[%s676 + $0x34] sm:$0xf]
    %v691 = vld [vmem:[%s676 + $0x38] sm:$0xf]
    %v692 = vld [vmem:[%s676 + $0x3c] sm:$0xf]
    %v693 = vld [vmem:[%s676 + $0x40] sm:$0xf]
    %v694 = vld [vmem:[%s676 + $0x44] sm:$0xf]
    %v695 = vld [vmem:[%s676 + $0x48] sm:$0xf]
    %v696 = vld [vmem:[%s676 + $0x4c] sm:$0xf]
    %v697 = vld [vmem:[%s676 + $0x50] sm:$0xf]
    %v698 = vld [vmem:[%s676 + $0x54] sm:$0xf]
    %v699 = vld [vmem:[%s676 + $0x58] sm:$0xf]
    %v700 = vld [vmem:[%s676 + $0x5c] sm:$0xf]
    %v701 = vld [vmem:[%s676 + $0x60] sm:$0xf]
    %v702 = vld [vmem:[%s676 + $0x64] sm:$0xf]
    %v703 = vld [vmem:[%s676 + $0x68] sm:$0xf]
    %v704 = vld [vmem:[%s676 + $0x6c] sm:$0xf]
    %v705 = vld [vmem:[%s676 + $0x70] sm:$0xf]
    %v706 = vld [vmem:[%s676 + $0x74] sm:$0xf]
    %v707 = vld [vmem:[%s676 + $0x78] sm:$0xf]
    %v708 = vld [vmem:[%s676 + $0x7c] sm:$0xf]
    %v709 = vld [vmem:[%s676 + $0x80] sm:$0xf]
    %v710 = vld [vmem:[%s676 + $0x84] sm:$0xf]
    %v711 = vld [vmem:[%s676 + $0x88] sm:$0xf]
    %v712 = vld [vmem:[%s676 + $0x8c] sm:$0xf]
    %v713 = vld [vmem:[%s676 + $0x90] sm:$0xf]
    %v714 = vld [vmem:[%s676 + $0x94] sm:$0xf]
    %v715 = vld [vmem:[%s676 + $0x98] sm:$0xf]
    %v716 = vld [vmem:[%s676 + $0x9c] sm:$0xf]
    %v717 = vld [vmem:[%s676 + $0xa0] sm:$0xf]
    %v718 = vld [vmem:[%s676 + $0xa4] sm:$0xf]
    %v719 = vld [vmem:[%s676 + $0xa8] sm:$0xf]
    %v720 = vld [vmem:[%s676 + $0xac] sm:$0xf]
    %v721 = vld [vmem:[%s676 + $0xb0] sm:$0xf]
    %v722 = vld [vmem:[%s676 + $0xb4] sm:$0xf]
    %v723 = vld [vmem:[%s676 + $0xb8] sm:$0xf]
    %v724 = vld [vmem:[%s676 + $0xbc] sm:$0xf]
    %v725 = vpack.c.bf16 0.0, %v654
    %v726 = vpack.c.bf16 %v665, 0.0
    %v727 = vpack.c.bf16 %v675, %v675
    %v776 = vunpack.c.l.b16 %v677
    %v777 = vunpack.c.l.b16 %v678
    %v778 = vunpack.c.l.b16 %v679
    %v779 = vunpack.c.l.b16 %v680
    %v780 = vunpack.c.l.b16 %v681
    %v781 = vunpack.c.l.b16 %v682
    %v782 = vunpack.c.l.b16 %v683
    %v783 = vunpack.c.l.b16 %v684
    %v784 = vunpack.c.l.b16 %v685
    %v785 = vunpack.c.l.b16 %v686
    %v786 = vunpack.c.l.b16 %v687
    %v787 = vunpack.c.l.b16 %v688
    %v788 = vunpack.c.l.b16 %v689
    %v789 = vunpack.c.l.b16 %v690
    %v790 = vunpack.c.l.b16 %v691
    %v791 = vunpack.c.l.b16 %v692
    %v792 = vunpack.c.l.b16 %v693
    %v793 = vunpack.c.l.b16 %v694
    %v794 = vunpack.c.l.b16 %v695
    %v795 = vunpack.c.l.b16 %v696
    %v796 = vunpack.c.l.b16 %v697
    %v797 = vunpack.c.l.b16 %v698
    %v798 = vunpack.c.l.b16 %v699
    %v799 = vunpack.c.l.b16 %v700
    %v800 = vunpack.c.l.b16 %v701
    %v801 = vunpack.c.l.b16 %v702
    %v802 = vunpack.c.l.b16 %v703
    %v803 = vunpack.c.l.b16 %v704
    %v804 = vunpack.c.l.b16 %v705
    %v805 = vunpack.c.l.b16 %v706
    %v806 = vunpack.c.l.b16 %v707
    %v807 = vunpack.c.l.b16 %v708
    %v808 = vunpack.c.l.b16 %v709
    %v809 = vunpack.c.l.b16 %v710
    %v810 = vunpack.c.l.b16 %v711
    %v811 = vunpack.c.l.b16 %v712
    %v812 = vunpack.c.l.b16 %v713
    %v813 = vunpack.c.l.b16 %v714
    %v814 = vunpack.c.l.b16 %v715
    %v815 = vunpack.c.l.b16 %v716
    %v816 = vunpack.c.l.b16 %v717
    %v817 = vunpack.c.l.b16 %v718
    %v818 = vunpack.c.l.b16 %v719
    %v819 = vunpack.c.l.b16 %v720
    %v820 = vunpack.c.l.b16 %v721
    %v821 = vunpack.c.l.b16 %v722
    %v822 = vunpack.c.l.b16 %v723
    %v823 = vunpack.c.l.b16 %v724
    %v824 = vpack.c.b16 %v777, %v776
    %v825 = vpack.c.b16 %v779, %v778
    %v826 = vpack.c.b16 %v781, %v780
    %v827 = vpack.c.b16 %v783, %v782
    %v828 = vpack.c.b16 %v785, %v784
    %v829 = vpack.c.b16 %v787, %v786
    %v830 = vpack.c.b16 %v789, %v788
    %v831 = vpack.c.b16 %v791, %v790
    %v832 = vpack.c.b16 %v793, %v792
    %v833 = vpack.c.b16 %v795, %v794
    %v834 = vpack.c.b16 %v797, %v796
    %v835 = vpack.c.b16 %v799, %v798
    %v836 = vpack.c.b16 %v801, %v800
    %v837 = vpack.c.b16 %v803, %v802
    %v838 = vpack.c.b16 %v805, %v804
    %v839 = vpack.c.b16 %v807, %v806
    %v840 = vpack.c.b16 %v809, %v808
    %v841 = vpack.c.b16 %v811, %v810
    %v842 = vpack.c.b16 %v813, %v812
    %v843 = vpack.c.b16 %v815, %v814
    %v844 = vpack.c.b16 %v817, %v816
    %v845 = vpack.c.b16 %v819, %v818
    %v846 = vpack.c.b16 %v821, %v820
    %v847 = vpack.c.b16 %v823, %v822
    %872 = vmatprep.subr.bf16.mxu0 0
    %873 = vmatpush1.bf16.msra.mxu0 %v824
    %874 = vmatprep.subr.bf16.mxu0 0
    %875 = vmatpush1.bf16.msra.mxu0 %v825
    %876 = vmatprep.subr.bf16.mxu0 0
    %877 = vmatpush1.bf16.msra.mxu0 %v826
    %878 = vmatprep.subr.bf16.mxu0 0
    %879 = vmatpush1.bf16.msra.mxu0 %v827
    %880 = vmatprep.subr.bf16.mxu0 0
    %881 = vmatpush1.bf16.msra.mxu0 %v828
    %882 = vmatprep.subr.bf16.mxu0 0
    %883 = vmatpush1.bf16.msra.mxu0 %v829
    %884 = vmatprep.subr.bf16.mxu0 0
    %885 = vmatpush1.bf16.msra.mxu0 %v830
    %886 = vmatprep.subr.bf16.mxu0 0
    %887 = vmatpush1.bf16.msra.mxu0 %v831
    %888 = vmatprep.subr.bf16.mxu0 0
    %889 = vmatpush1.bf16.msra.mxu0 %v832
    %890 = vmatprep.subr.bf16.mxu0 0
    %891 = vmatpush1.bf16.msra.mxu0 %v833
    %892 = vmatprep.subr.bf16.mxu0 0
    %893 = vmatpush1.bf16.msra.mxu0 %v834
    %894 = vmatprep.subr.bf16.mxu0 0
    %895 = vmatpush1.bf16.msra.mxu0 %v835
    %896 = vmatprep.subr.bf16.mxu0 0
    %897 = vmatpush1.bf16.msra.mxu0 %v836
    %898 = vmatprep.subr.bf16.mxu0 0
    %899 = vmatpush1.bf16.msra.mxu0 %v837
    %900 = vmatprep.subr.bf16.mxu0 0
    %901 = vmatpush1.bf16.msra.mxu0 %v838
    %902 = vmatprep.subr.bf16.mxu0 0
    %903 = vmatpush1.bf16.msra.mxu0 %v839
    %904 = vmatprep.mubr.bf16.mxu0 %v726
    %905 = vmatmul.mubr.bf16.gmra.mrb[0].mxu0 %v725
    %v906 = vpop.f32.mrb[0].mxu0
    %v907 = vadd.f32 0.0, %v906
    %v908 = vpop.f32.mrb[0].mxu0
    %v909 = vpop.f32.mrb[0].mxu0
    %v910 = vadd.f32 0.0, %v909
    %v911 = vpop.f32.mrb[0].mxu0
    %912 = vmatprep.mubr.bf16.mxu0 %v399
    %913 = vmatmul.mubr.bf16.gmra.mrb[0].mxu0 %v399
    %v914 = vpop.f32.mrb[0].mxu0
    %v915 = vadd.f32 0.0, %v914
    %v916 = vpop.f32.mrb[0].mxu0
    %v917 = vpop.f32.mrb[0].mxu0
    %v918 = vpop.f32.mrb[0].mxu0
    %919 = vdwg.mxu0
    %920 = vmatprep.subr.bf16.mxu0 0
    %921 = vmatpush1.bf16.msra.mxu0 %v840
    %922 = vmatprep.subr.bf16.mxu0 0
    %923 = vmatpush1.bf16.msra.mxu0 %v841
    %924 = vmatprep.subr.bf16.mxu0 0
    %925 = vmatpush1.bf16.msra.mxu0 %v842
    %926 = vmatprep.subr.bf16.mxu0 0
    %927 = vmatpush1.bf16.msra.mxu0 %v843
    %928 = vmatprep.subr.bf16.mxu0 0
    %929 = vmatpush1.bf16.msra.mxu0 %v844
    %930 = vmatprep.subr.bf16.mxu0 0
    %931 = vmatpush1.bf16.msra.mxu0 %v845
    %932 = vmatprep.subr.bf16.mxu0 0
    %933 = vmatpush1.bf16.msra.mxu0 %v846
    %934 = vmatprep.subr.bf16.mxu0 0
    %935 = vmatpush1.bf16.msra.mxu0 %v847
    %936 = vmatprep.subr.bf16.mxu0 0
    %937 = vmatpush1.bf16.msra.mxu0 0
    %938 = vmatprep.subr.bf16.mxu0 0
    %939 = vmatpush1.bf16.msra.mxu0 0
    %940 = vmatprep.subr.bf16.mxu0 0
    %941 = vmatpush1.bf16.msra.mxu0 0
    %942 = vmatprep.subr.bf16.mxu0 0
    %943 = vmatpush1.bf16.msra.mxu0 0
    %944 = vmatprep.subr.bf16.mxu0 0
    %945 = vmatpush1.bf16.msra.mxu0 0
    %946 = vmatprep.subr.bf16.mxu0 0
    %947 = vmatpush1.bf16.msra.mxu0 0
    %948 = vmatprep.subr.bf16.mxu0 0
    %949 = vmatpush1.bf16.msra.mxu0 0
    %950 = vmatprep.subr.bf16.mxu0 0
    %951 = vmatpush1.bf16.msra.mxu0 0
    %952 = vmatprep.mubr.bf16.mxu0 0
    %953 = vmatmul.mubr.bf16.gmra.mrb[0].mxu0 %v399
    %v954 = vpop.f32.mrb[0].mxu0
    %v955 = vadd.f32 %v907, %v954
    %v956 = vpop.f32.mrb[0].mxu0
    %v957 = vpop.f32.mrb[0].mxu0
    %v958 = vadd.f32 %v910, %v957
    %v959 = vpop.f32.mrb[0].mxu0
    %960 = vmatprep.mubr.bf16.mxu0 0
    %961 = vmatmul.mubr.bf16.gmra.mrb[0].mxu0 %v727
    %v962 = vpop.f32.mrb[0].mxu0
    %v963 = vadd.f32 %v915, %v962
    %v964 = vpop.f32.mrb[0].mxu0
    %v965 = vpop.f32.mrb[0].mxu0
    %v966 = vpop.f32.mrb[0].mxu0
    %967 = vdwg.mxu0
    %s968 = scalar_lea.vmem %s4, 1
    %v969 = vld [vmem:[%s968] sm:$0x1]
    %v971 = vlaneseq
    %v972 = vshrl.u32 %v971, 7
    %v973 = vsub.s32 0, %v972
    %v974 = vrot.slane %v969, %v973
    %v976 = vadd.f32 %v955, %v974
    %v977 = vxor.u32 %v976, 2147483648
    %v978 = vmul.f32 %v977, 1.442695
    %v979 = vpow.pop %v978
    %v980 = vadd.f32 %v979, 1.0
    %v981 = vrcp.pop %v980
    %v982 = vmul.f32 1.0, %v981
    %s983 = scalar_lea.vmem %s4, 3
    %v984 = vld [vmem:[%s983] sm:$0x1]
    %v986 = vlaneseq
    %v987 = vshrl.u32 %v986, 7
    %v988 = vsub.s32 0, %v987
    %v989 = vrot.slane %v984, %v988
    %v991 = vadd.f32 %v958, %v989
    %v992 = vmax.f32 %v991, 0.0
    %v993 = vadd.f32 %v665, %v992
    %s994 = scalar_lea.vmem %s4, 5
    %v995 = vld [vmem:[%s994] sm:$0x1]
    %v997 = vlaneseq
    %v998 = vshrl.u32 %v997, 7
    %v999 = vsub.s32 0, %v998
    %v1000 = vrot.slane %v995, %v999
    %v1002 = vadd.f32 %v963, %v1000
    %v1003 = vmax.f32 %v1002, 0.0
    %v1004 = vld [vmem:[%s5] sm:$0x1]
    %v1005 = vunpack.c.l.bf16 %v1004
    %v1006 = vlaneseq
    %v1007 = vshrl.u32 %v1006, 7
    %v1008 = vsub.s32 0, %v1007
    %v1009 = vrot.slane %v1005, %v1008
    %v1010 = vmul.f32 %v982, %v1009
    %1011 = vadd.xlane.f32.xlu0 %v1010
    %v1012 = vpop.xlane.xlu0 %1011
    %v1013 = vld [vmem:[#allocation8] sm:$0xf]
    %v1014 = vld [vmem:[#allocation8 + $0x4] sm:$0xf]
    %v1015 = vld [vmem:[#allocation8 + $0x8] sm:$0xf]
    %v1016 = vld [vmem:[#allocation8 + $0xc] sm:$0xf]
    %v1017 = vld [vmem:[#allocation8 + $0x10] sm:$0xf]
    %v1018 = vld [vmem:[#allocation8 + $0x14] sm:$0xf]
    %v1019 = vld [vmem:[#allocation8 + $0x18] sm:$0xf]
    %v1020 = vld [vmem:[#allocation8 + $0x1c] sm:$0xf]
    %v1021 = vld [vmem:[#allocation8 + $0x20] sm:$0xf]
    %v1022 = vld [vmem:[#allocation8 + $0x24] sm:$0xf]
    %v1023 = vld [vmem:[#allocation8 + $0x28] sm:$0xf]
    %v1024 = vld [vmem:[#allocation8 + $0x2c] sm:$0xf]
    %v1025 = vld [vmem:[#allocation8 + $0x30] sm:$0xf]
    %v1026 = vld [vmem:[#allocation8 + $0x34] sm:$0xf]
    %v1027 = vld [vmem:[#allocation8 + $0x38] sm:$0xf]
    %v1028 = vld [vmem:[#allocation8 + $0x3c] sm:$0xf]
    %v1029 = vpack.c.bf16 %v993, %v993
    %s1030 = scalar_lea.vmem [#allocation8], 64
    %v1031 = vld [vmem:[%s1030] sm:$0xf]
    %v1032 = vld [vmem:[%s1030 + $0x4] sm:$0xf]
    %v1033 = vld [vmem:[%s1030 + $0x8] sm:$0xf]
    %v1034 = vld [vmem:[%s1030 + $0xc] sm:$0xf]
    %v1035 = vld [vmem:[%s1030 + $0x10] sm:$0xf]
    %v1036 = vld [vmem:[%s1030 + $0x14] sm:$0xf]
    %v1037 = vld [vmem:[%s1030 + $0x18] sm:$0xf]
    %v1038 = vld [vmem:[%s1030 + $0x1c] sm:$0xf]
    %v1039 = vld [vmem:[%s1030 + $0x20] sm:$0xf]
    %v1040 = vld [vmem:[%s1030 + $0x24] sm:$0xf]
    %v1041 = vld [vmem:[%s1030 + $0x28] sm:$0xf]
    %v1042 = vld [vmem:[%s1030 + $0x2c] sm:$0xf]
    %v1043 = vld [vmem:[%s1030 + $0x30] sm:$0xf]
    %v1044 = vld [vmem:[%s1030 + $0x34] sm:$0xf]
    %v1045 = vld [vmem:[%s1030 + $0x38] sm:$0xf]
    %v1046 = vld [vmem:[%s1030 + $0x3c] sm:$0xf]
    %v1047 = vpack.c.bf16 %v1003, %v1003
    %v1064 = vunpack.c.l.b16 %v1031
    %v1065 = vunpack.c.l.b16 %v1032
    %v1066 = vunpack.c.l.b16 %v1033
    %v1067 = vunpack.c.l.b16 %v1034
    %v1068 = vunpack.c.l.b16 %v1035
    %v1069 = vunpack.c.l.b16 %v1036
    %v1070 = vunpack.c.l.b16 %v1037
    %v1071 = vunpack.c.l.b16 %v1038
    %v1072 = vunpack.c.l.b16 %v1039
    %v1073 = vunpack.c.l.b16 %v1040
    %v1074 = vunpack.c.l.b16 %v1041
    %v1075 = vunpack.c.l.b16 %v1042
    %v1076 = vunpack.c.l.b16 %v1043
    %v1077 = vunpack.c.l.b16 %v1044
    %v1078 = vunpack.c.l.b16 %v1045
    %v1079 = vunpack.c.l.b16 %v1046
    %v1080 = vpack.c.b16 %v1065, %v1064
    %v1081 = vpack.c.b16 %v1067, %v1066
    %v1082 = vpack.c.b16 %v1069, %v1068
    %v1083 = vpack.c.b16 %v1071, %v1070
    %v1084 = vpack.c.b16 %v1073, %v1072
    %v1085 = vpack.c.b16 %v1075, %v1074
    %v1086 = vpack.c.b16 %v1077, %v1076
    %v1087 = vpack.c.b16 %v1079, %v1078
    %1096 = vmatprep.subr.bf16.mxu0 0
    %1097 = vmatpush1.bf16.msra.mxu0 %v1080
    %1098 = vmatprep.subr.bf16.mxu0 0
    %1099 = vmatpush1.bf16.msra.mxu0 %v1081
    %1100 = vmatprep.subr.bf16.mxu0 0
    %1101 = vmatpush1.bf16.msra.mxu0 %v1082
    %1102 = vmatprep.subr.bf16.mxu0 0
    %1103 = vmatpush1.bf16.msra.mxu0 %v1083
    %1104 = vmatprep.subr.bf16.mxu0 0
    %1105 = vmatpush1.bf16.msra.mxu0 %v1084
    %1106 = vmatprep.subr.bf16.mxu0 0
    %1107 = vmatpush1.bf16.msra.mxu0 %v1085
    %1108 = vmatprep.subr.bf16.mxu0 0
    %1109 = vmatpush1.bf16.msra.mxu0 %v1086
    %1110 = vmatprep.subr.bf16.mxu0 0
    %1111 = vmatpush1.bf16.msra.mxu0 %v1087
    %1112 = vmatprep.subr.bf16.mxu0 0
    %1113 = vmatpush1.bf16.msra.mxu0 0
    %1114 = vmatprep.subr.bf16.mxu0 0
    %1115 = vmatpush1.bf16.msra.mxu0 0
    %1116 = vmatprep.subr.bf16.mxu0 0
    %1117 = vmatpush1.bf16.msra.mxu0 0
    %1118 = vmatprep.subr.bf16.mxu0 0
    %1119 = vmatpush1.bf16.msra.mxu0 0
    %1120 = vmatprep.subr.bf16.mxu0 0
    %1121 = vmatpush1.bf16.msra.mxu0 0
    %1122 = vmatprep.subr.bf16.mxu0 0
    %1123 = vmatpush1.bf16.msra.mxu0 0
    %1124 = vmatprep.subr.bf16.mxu0 0
    %1125 = vmatpush1.bf16.msra.mxu0 0
    %1126 = vmatprep.subr.bf16.mxu0 0
    %1127 = vmatpush1.bf16.msra.mxu0 0
    %1128 = vmatprep.mubr.bf16.mxu0 0
    %1129 = vmatmul.mubr.bf16.gmra.mrb[0].mxu0 %v1047
    %v1130 = vpop.f32.mrb[0].mxu0
    %v1131 = vadd.f32 0.0, %v1130
    %v1132 = vpop.f32.mrb[0].mxu0
    %v1133 = vpop.f32.mrb[0].mxu0
    %v1134 = vpop.f32.mrb[0].mxu0
    %1135 = vdwg.mxu0
    %v1136 = vmul.f32 %v1131, %v81
    %v1153 = vunpack.c.l.b16 %v1013
    %v1154 = vunpack.c.l.b16 %v1014
    %v1155 = vunpack.c.l.b16 %v1015
    %v1156 = vunpack.c.l.b16 %v1016
    %v1157 = vunpack.c.l.b16 %v1017
    %v1158 = vunpack.c.l.b16 %v1018
    %v1159 = vunpack.c.l.b16 %v1019
    %v1160 = vunpack.c.l.b16 %v1020
    %v1161 = vunpack.c.l.b16 %v1021
    %v1162 = vunpack.c.l.b16 %v1022
    %v1163 = vunpack.c.l.b16 %v1023
    %v1164 = vunpack.c.l.b16 %v1024
    %v1165 = vunpack.c.l.b16 %v1025
    %v1166 = vunpack.c.l.b16 %v1026
    %v1167 = vunpack.c.l.b16 %v1027
    %v1168 = vunpack.c.l.b16 %v1028
    %v1169 = vpack.c.b16 %v1154, %v1153
    %v1170 = vpack.c.b16 %v1156, %v1155
    %v1171 = vpack.c.b16 %v1158, %v1157
    %v1172 = vpack.c.b16 %v1160, %v1159
    %v1173 = vpack.c.b16 %v1162, %v1161
    %v1174 = vpack.c.b16 %v1164, %v1163
    %v1175 = vpack.c.b16 %v1166, %v1165
    %v1176 = vpack.c.b16 %v1168, %v1167
    %1185 = vmatprep.subr.bf16.mxu0 0
    %1186 = vmatpush1.bf16.msra.mxu0 %v1169
    %1187 = vmatprep.subr.bf16.mxu0 0
    %1188 = vmatpush1.bf16.msra.mxu0 %v1170
    %1189 = vmatprep.subr.bf16.mxu0 0
    %1190 = vmatpush1.bf16.msra.mxu0 %v1171
    %1191 = vmatprep.subr.bf16.mxu0 0
    %1192 = vmatpush1.bf16.msra.mxu0 %v1172
    %1193 = vmatprep.subr.bf16.mxu0 0
    %1194 = vmatpush1.bf16.msra.mxu0 %v1173
    %1195 = vmatprep.subr.bf16.mxu0 0
    %1196 = vmatpush1.bf16.msra.mxu0 %v1174
    %1197 = vmatprep.subr.bf16.mxu0 0
    %1198 = vmatpush1.bf16.msra.mxu0 %v1175
    %1199 = vmatprep.subr.bf16.mxu0 0
    %1200 = vmatpush1.bf16.msra.mxu0 %v1176
    %1201 = vmatprep.subr.bf16.mxu0 0
    %1202 = vmatpush1.bf16.msra.mxu0 0
    %1203 = vmatprep.subr.bf16.mxu0 0
    %1204 = vmatpush1.bf16.msra.mxu0 0
    %1205 = vmatprep.subr.bf16.mxu0 0
    %1206 = vmatpush1.bf16.msra.mxu0 0
    %1207 = vmatprep.subr.bf16.mxu0 0
    %1208 = vmatpush1.bf16.msra.mxu0 0
    %1209 = vmatprep.subr.bf16.mxu0 0
    %1210 = vmatpush1.bf16.msra.mxu0 0
    %1211 = vmatprep.subr.bf16.mxu0 0
    %1212 = vmatpush1.bf16.msra.mxu0 0
    %1213 = vmatprep.subr.bf16.mxu0 0
    %1214 = vmatpush1.bf16.msra.mxu0 0
    %1215 = vmatprep.subr.bf16.mxu0 0
    %1216 = vmatpush1.bf16.msra.mxu0 0
    %1217 = vmatprep.mubr.bf16.mxu0 0
    %1218 = vmatmul.mubr.bf16.gmra.mrb[0].mxu0 %v1029
    %v1219 = vpop.f32.mrb[0].mxu0
    %v1220 = vadd.f32 %v1136, %v1219
    %v1221 = vpop.f32.mrb[0].mxu0
    %v1222 = vpop.f32.mrb[0].mxu0
    %v1223 = vpop.f32.mrb[0].mxu0
    %1224 = vdwg.mxu0
    %v1225 = vmul.f32 %v1012, %v1220
    %1226 = vst [vmem:[#allocation10] sm:$0xff] %v1225
    // Predicated region
    $region46: #{tpu_custom_call.1} parent=1 // pred_check
      _
    $region47: #{tpu_custom_call.1} parent=1 // pred_check_branch
      %1228 = sbr.rel (0) target = $region49
    $region48: #{tpu_custom_call.1} parent=1 // pred_region
      %s1230 = ssub.s32 128, 128
      %1231 = vsyncadd [#allocation4], %s1230
      %s1233 = sshll.u32 [#allocation10], 4
      %s1234 = int_to_ptr.vmem [resolvable:$true] %s1233
      %1236 = dma.vmem_to_hbm [thread:$0]  %s1234, 128, %s7, [#allocation4]
    $region49: #{tpu_custom_call.1} parent=1 // pred_fallthru
      _
    // Predicated region
    $region50: #{tpu_custom_call.1} parent=1 // pred_check
      _
    $region51: #{tpu_custom_call.1} parent=1 // pred_check_branch
      %1238 = sbr.rel (0) target = $region53
    $region52: #{tpu_custom_call.1} parent=1 // pred_region
      %1239 = dma.done [#allocation4], 128
    $region53: #{tpu_custom_call.1} parent=1 // pred_fallthru
      _
    %1240 = vsyncpa [#allocation3], 1
    %1241 = vsyncpa [#allocation6], 1
    %1242 = vsyncpa [#allocation9], 1
    %1243 = vsyncpa [#allocation4], 1

</llo_original>
